<compile_context>
chip_gen: v6e
topology: v6e:2x2x1
jax: 0.10.0
libtpu: 0.0.40
codegen_flags: <defaults>
</compile_context>

<pallas_src>
import functools

import jax
import jax.numpy as jnp
from jax.experimental import pallas as pl
from jax.experimental.pallas import tpu as pltpu


def _rnn_seq_kernel(x_ref, h0_ref, w1x_ref, w1h_ref, b1_ref, w2_ref, b2_ref,
                    y_ref, h_ref):
    t = pl.program_id(0)

    # Initialize the carried hidden state (resident output block) from h0.
    @pl.when(t == 0)
    def _():
        h_ref[...] = h0_ref[...]

    x = x_ref[0]                       # [Bp, I]  f32
    h = h_ref[...]                     # [Bp, S]  f32 (carried in VMEM)

    # fc1 on cat(x, h): two MXU passes against resident bf16 weights,
    # f32 accumulation; bias add + tanh in f32 (EUP).
    pre = (
        jnp.dot(x.astype(jnp.bfloat16), w1x_ref[...],
                preferred_element_type=jnp.float32)
        + jnp.dot(h.astype(jnp.bfloat16), w1h_ref[...],
                  preferred_element_type=jnp.float32)
        + b1_ref[...]
    )
    h_next = jnp.tanh(pre)             # [Bp, S] f32
    h_ref[...] = h_next                # carry to next grid step; HBM write only at end

    # fc2 into the lane-dense (128-wide padded) output slab.
    y = (jnp.dot(h_next.astype(jnp.bfloat16), w2_ref[...],
                 preferred_element_type=jnp.float32)
         + b2_ref[...])
    y_ref[0] = y.astype(y_ref.dtype)


def _round_up(n, m):
    return ((n + m - 1) // m) * m


def prepare_params(w1, b1, w2, b2, input_size):
    """One-time parameter preprocessing (hoisted out of the time loop).

    w1: [I+S, S], b1: [S], w2: [S, O], b2: [O]  (all f32, `act @ W + b` layout).
    Splits W1 into x/h parts (== concat semantics), casts MXU operands to bf16,
    and pads the output projection to a lane-dense width (multiple of 128).
    """
    S = w1.shape[1]
    O = w2.shape[1]
    O_pad = _round_up(max(O, 128), 128)
    w1x = w1[:input_size, :].astype(jnp.bfloat16)        # [I, S]
    w1h = w1[input_size:, :].astype(jnp.bfloat16)        # [S, S]
    b1_2d = b1.reshape(1, S).astype(jnp.float32)
    w2_p = jnp.zeros((S, O_pad), jnp.bfloat16).at[:, :O].set(w2.astype(jnp.bfloat16))
    b2_p = jnp.zeros((1, O_pad), jnp.float32).at[0, :O].set(b2.astype(jnp.float32))
    return dict(w1x=w1x, w1h=w1h, b1=b1_2d, w2=w2_p, b2=b2_p, out_size=O)


@functools.partial(jax.jit, static_argnames=("out_size",))
def _stateful_mlp_seq(x_seq, h0, w1x, w1h, b1, w2, b2, *, out_size):
    T, B, I = x_seq.shape
    S = h0.shape[1]
    O_pad = w2.shape[1]
    Bp = _round_up(max(B, 8), 8)       # full f32 sublane group

    # Pad batch once at the boundary (padded rows are sliced away below).
    x_p = jnp.zeros((T, Bp, I), jnp.float32).at[:, :B, :].set(x_seq)
    h0_p = jnp.zeros((Bp, S), jnp.float32).at[:B, :].set(h0)

    const2 = lambda t: (0, 0)          # resident-in-VMEM across the time grid

    y_pad, h_last_pad = pl.pallas_call(
        _rnn_seq_kernel,
        out_shape=(
            jax.ShapeDtypeStruct((T, Bp, O_pad), jnp.float32),
            jax.ShapeDtypeStruct((Bp, S), jnp.float32),
        ),
        grid=(T,),
        in_specs=[
            pl.BlockSpec((1, Bp, I), lambda t: (t, 0, 0)),   # x_t (per-step DMA)
            pl.BlockSpec((Bp, S), const2),                   # h0
            pl.BlockSpec((I, S), const2),                    # W1x  (resident)
            pl.BlockSpec((S, S), const2),                    # W1h  (resident)
            pl.BlockSpec((1, S), const2),                    # b1
            pl.BlockSpec((S, O_pad), const2),                # W2   (resident)
            pl.BlockSpec((1, O_pad), const2),                # b2
        ],
        out_specs=(
            pl.BlockSpec((1, Bp, O_pad), lambda t: (t, 0, 0)),  # y_t (lane-dense)
            pl.BlockSpec((Bp, S), const2),                      # h carried / h_last
        ),
        compiler_params=pltpu.CompilerParams(
            # h is carried across t, so the time axis must be "arbitrary".
            # (Footprint ~100 KiB, far below the scoped-VMEM default; no
            #  explicit vmem_limit_bytes needed at this size.)
            dimension_semantics=("arbitrary",),
        ),
    )(x_p, h0_p, w1x, w1h, b1, w2, b2)

    return y_pad[:, :B, :out_size], h_last_pad[:B, :]


def stateful_mlp_seq(x_seq, h0, params):
    """Runs the StatefulMLP recurrence over a sequence.

    x_seq: [T, B, I], h0: [B, S]  ->  (y_seq [T, B, O], h_last [B, S]).
    Each step t reproduces the PyTorch forward(x_t, h_t) -> (y_t, h_{t+1}).
    """
    return _stateful_mlp_seq(x_seq, h0, params["w1x"], params["w1h"],
                             params["b1"], params["w2"], params["b2"],
                             out_size=params["out_size"])


if __name__ == "__main__":
    # Small, module-consistent sizes: vocab (input/output) = 32, state = 128.
    input_size = 32
    output_size = 32
    state_size = 128
    batch = 2
    seq_len = 8

    key = jax.random.PRNGKey(0)
    k_x, k_w1, k_b1, k_w2, k_b2 = jax.random.split(key, 5)

    # Deterministic parameter init (uniform, roughly matching nn.Linear scale),
    # stored pre-transposed as [in_features, out_features].
    fan1 = input_size + state_size
    w1 = jax.random.uniform(k_w1, (fan1, state_size), jnp.float32,
                            -1.0 / jnp.sqrt(fan1), 1.0 / jnp.sqrt(fan1))
    b1 = jax.random.uniform(k_b1, (state_size,), jnp.float32,
                            -1.0 / jnp.sqrt(fan1), 1.0 / jnp.sqrt(fan1))
    w2 = jax.random.uniform(k_w2, (state_size, output_size), jnp.float32,
                            -1.0 / jnp.sqrt(state_size), 1.0 / jnp.sqrt(state_size))
    b2 = jax.random.uniform(k_b2, (state_size,), jnp.float32,
                            -1.0 / jnp.sqrt(state_size), 1.0 / jnp.sqrt(state_size))[:output_size]

    # Inputs: a sequence of char features and the init_state (zeros).
    x_seq = jax.random.uniform(k_x, (seq_len, batch, input_size), jnp.float32)
    h0 = jnp.zeros((batch, state_size), jnp.float32)

    params = prepare_params(w1, b1, w2, b2, input_size)   # one-time setup

    y_seq, h_last = stateful_mlp_seq(x_seq, h0, params)
    jax.block_until_ready((y_seq, h_last))

    # Reference 1: per-step PyTorch semantics with the same bf16-operand /
    # f32-accumulate casting the kernel uses (tight tolerance).
    w1x_bf, w1h_bf = params["w1x"], params["w1h"]
    w2_bf = params["w2"][:, :output_size]
    b1_f, b2_f = params["b1"][0], params["b2"][0, :output_size]

    def step_bf16(h, x):
        pre = (jnp.dot(x.astype(jnp.bfloat16), w1x_bf, preferred_element_type=jnp.float32)
               + jnp.dot(h.astype(jnp.bfloat16), w1h_bf, preferred_element_type=jnp.float32)
               + b1_f)
        h_next = jnp.tanh(pre)
        y = (jnp.dot(h_next.astype(jnp.bfloat16), w2_bf, preferred_element_type=jnp.float32)
             + b2_f)
        return h_next, y

    h_last_ref, y_seq_ref = jax.lax.scan(step_bf16, h0, x_seq)
    assert jnp.allclose(y_seq, y_seq_ref, atol=2e-3, rtol=2e-3), "y mismatch"
    assert jnp.allclose(h_last, h_last_ref, atol=2e-3, rtol=2e-3), "h_last mismatch"

    # Reference 2: exact full-f32 PyTorch math (bf16 weight quantization only).
    def step_f32(h, x):
        combined = jnp.concatenate([x, h], axis=1)
        h_next = jnp.tanh(combined @ w1 + b1)
        return h_next, h_next @ w2 + b2

    h_f32, y_f32 = jax.lax.scan(step_f32, h0, x_seq)
    assert jnp.allclose(y_seq, y_f32, atol=5e-2), "y deviates too much from f32 reference"
    assert jnp.allclose(h_last, h_f32, atol=5e-2), "h deviates too much from f32 reference"

    print("KERNEL_OK")
</pallas_src>

<mosaic_0001>
module attributes {stable_mosaic.version = 11 : i64} {
  func.func @_rnn_seq_kernel(%arg0: i32, %arg1: memref<1x8x32xf32, #tpu.memory_space<vmem>>, %arg2: memref<8x128xf32, #tpu.memory_space<vmem>>, %arg3: memref<32x128xbf16, #tpu.memory_space<vmem>>, %arg4: memref<128x128xbf16, #tpu.memory_space<vmem>>, %arg5: memref<1x128xf32, #tpu.memory_space<vmem>>, %arg6: memref<128x128xbf16, #tpu.memory_space<vmem>>, %arg7: memref<1x128xf32, #tpu.memory_space<vmem>>, %arg8: memref<1x8x128xf32, #tpu.memory_space<vmem>>, %arg9: memref<8x128xf32, #tpu.memory_space<vmem>>) attributes {dimension_semantics = [#tpu.dimension_semantics<arbitrary>], iteration_bounds = array<i64: 8>, scalar_prefetch = 0 : i64, scratch_operands = 0 : i64, tpu.core_type = #tpu.core_type<tc>, window_params = [{transform_indices = @transform_0, window_bounds = array<i64: 1, 8, 32>}, {pipeline_mode = #tpu.pipeline_mode<synchronous>, transform_indices = @transform_1, window_bounds = array<i64: 8, 128>}, {pipeline_mode = #tpu.pipeline_mode<synchronous>, transform_indices = @transform_2, window_bounds = array<i64: 32, 128>}, {pipeline_mode = #tpu.pipeline_mode<synchronous>, transform_indices = @transform_3, window_bounds = array<i64: 128, 128>}, {pipeline_mode = #tpu.pipeline_mode<synchronous>, transform_indices = @transform_4, window_bounds = array<i64: 1, 128>}, {pipeline_mode = #tpu.pipeline_mode<synchronous>, transform_indices = @transform_5, window_bounds = array<i64: 128, 128>}, {pipeline_mode = #tpu.pipeline_mode<synchronous>, transform_indices = @transform_6, window_bounds = array<i64: 1, 128>}, {transform_indices = @transform_7, window_bounds = array<i64: 1, 8, 128>}, {pipeline_mode = #tpu.pipeline_mode<synchronous>, transform_indices = @transform_8, window_bounds = array<i64: 8, 128>}]} {
    %c0_i32 = arith.constant 0 : i32
    %0 = arith.cmpi eq, %arg0, %c0_i32 : i32
    %1 = arith.extui %0 : i1 to i32
    %c0_i32_0 = arith.constant 0 : i32
    %2 = arith.cmpi ne, %1, %c0_i32_0 : i32
    scf.if %2 {
      %c0_22 = arith.constant 0 : index
      %c0_23 = arith.constant 0 : index
      %27 = vector.load %arg2[%c0_22, %c0_23] : memref<8x128xf32, #tpu.memory_space<vmem>>, vector<8x128xf32>
      %c0_24 = arith.constant 0 : index
      %c0_25 = arith.constant 0 : index
      %28 = vector.load %arg9[%c0_24, %c0_25] : memref<8x128xf32, #tpu.memory_space<vmem>>, vector<8x128xf32>
      tpu.vector_store %arg9[%c0_24, %c0_25], %27 {strides = array<i32>} : memref<8x128xf32, #tpu.memory_space<vmem>>, vector<8x128xf32>,
    } else {
    }
    %c0 = arith.constant 0 : index
    %c0_1 = arith.constant 0 : index
    %c0_2 = arith.constant 0 : index
    %3 = vector.load %arg1[%c0, %c0_1, %c0_2] : memref<1x8x32xf32, #tpu.memory_space<vmem>>, vector<1x8x32xf32>
    %4 = vector.shape_cast %3 : vector<1x8x32xf32> to vector<8x32xf32>
    %c0_3 = arith.constant 0 : index
    %c0_4 = arith.constant 0 : index
    %5 = vector.load %arg9[%c0_3, %c0_4] : memref<8x128xf32, #tpu.memory_space<vmem>>, vector<8x128xf32>
    %6 = arith.truncf %4 : vector<8x32xf32> to vector<8x32xbf16>
    %c0_5 = arith.constant 0 : index
    %c0_6 = arith.constant 0 : index
    %7 = vector.load %arg3[%c0_5, %c0_6] : memref<32x128xbf16, #tpu.memory_space<vmem>>, vector<32x128xbf16>
    %cst = arith.constant dense<0.000000e+00> : vector<8x128xf32>
    %8 = tpu.matmul %6, %7, %cst {dimension_numbers = #tpu.dot_dimension_numbers<[1], [0], [0], [1], [0, 0, 1, 1], [], []>} : vector<8x32xbf16>, vector<32x128xbf16>, vector<8x128xf32> -> vector<8x128xf32>
    %9 = arith.truncf %5 : vector<8x128xf32> to vector<8x128xbf16>
    %c0_7 = arith.constant 0 : index
    %c0_8 = arith.constant 0 : index
    %10 = vector.load %arg4[%c0_7, %c0_8] : memref<128x128xbf16, #tpu.memory_space<vmem>>, vector<128x128xbf16>
    %cst_9 = arith.constant dense<0.000000e+00> : vector<8x128xf32>
    %11 = tpu.matmul %9, %10, %cst_9 {dimension_numbers = #tpu.dot_dimension_numbers<[1], [0], [0], [1], [0, 0, 1, 1], [], []>} : vector<8x128xbf16>, vector<128x128xbf16>, vector<8x128xf32> -> vector<8x128xf32>
    %12 = arith.addf %8, %11 : vector<8x128xf32>
    %c0_10 = arith.constant 0 : index
    %c0_11 = arith.constant 0 : index
    %13 = vector.load %arg5[%c0_10, %c0_11] : memref<1x128xf32, #tpu.memory_space<vmem>>, vector<1x128xf32>
    %14 = vector.broadcast %13 : vector<1x128xf32> to vector<8x128xf32>
    %15 = arith.addf %12, %14 : vector<8x128xf32>
    %16 = math.tanh %15 : vector<8x128xf32>
    %c0_12 = arith.constant 0 : index
    %c0_13 = arith.constant 0 : index
    %17 = vector.load %arg9[%c0_12, %c0_13] : memref<8x128xf32, #tpu.memory_space<vmem>>, vector<8x128xf32>
    tpu.vector_store %arg9[%c0_12, %c0_13], %16 {strides = array<i32>} : memref<8x128xf32, #tpu.memory_space<vmem>>, vector<8x128xf32>,
    %18 = arith.truncf %16 : vector<8x128xf32> to vector<8x128xbf16>
    %c0_14 = arith.constant 0 : index
    %c0_15 = arith.constant 0 : index
    %19 = vector.load %arg6[%c0_14, %c0_15] : memref<128x128xbf16, #tpu.memory_space<vmem>>, vector<128x128xbf16>
    %cst_16 = arith.constant dense<0.000000e+00> : vector<8x128xf32>
    %20 = tpu.matmul %18, %19, %cst_16 {dimension_numbers = #tpu.dot_dimension_numbers<[1], [0], [0], [1], [0, 0, 1, 1], [], []>} : vector<8x128xbf16>, vector<128x128xbf16>, vector<8x128xf32> -> vector<8x128xf32>
    %c0_17 = arith.constant 0 : index
    %c0_18 = arith.constant 0 : index
    %21 = vector.load %arg7[%c0_17, %c0_18] : memref<1x128xf32, #tpu.memory_space<vmem>>, vector<1x128xf32>
    %22 = vector.broadcast %21 : vector<1x128xf32> to vector<8x128xf32>
    %23 = arith.addf %20, %22 : vector<8x128xf32>
    %c0_19 = arith.constant 0 : index
    %c0_20 = arith.constant 0 : index
    %c0_21 = arith.constant 0 : index
    %24 = vector.load %arg8[%c0_19, %c0_20, %c0_21] : memref<1x8x128xf32, #tpu.memory_space<vmem>>, vector<1x8x128xf32>
    %25 = vector.shape_cast %24 : vector<1x8x128xf32> to vector<8x128xf32>
    %26 = vector.shape_cast %23 : vector<8x128xf32> to vector<1x8x128xf32>
    tpu.vector_store %arg8[%c0_19, %c0_20, %c0_21], %26 {strides = array<i32>} : memref<1x8x128xf32, #tpu.memory_space<vmem>>, vector<1x8x128xf32>,
    return
  }
  func.func @transform_0(%arg0: i32) -> (i32, i32, i32) {
    %c0_i32 = arith.constant 0 : i32
    %c0_i32_0 = arith.constant 0 : i32
    %c0_i32_1 = arith.constant 0 : i32
    return %arg0, %c0_i32, %c0_i32_0 : i32, i32, i32
  }
  func.func @transform_1(%arg0: i32) -> (i32, i32) {
    %c0_i32 = arith.constant 0 : i32
    %c0_i32_0 = arith.constant 0 : i32
    %c0_i32_1 = arith.constant 0 : i32
    return %c0_i32, %c0_i32_0 : i32, i32
  }
  func.func @transform_2(%arg0: i32) -> (i32, i32) {
    %c0_i32 = arith.constant 0 : i32
    %c0_i32_0 = arith.constant 0 : i32
    %c0_i32_1 = arith.constant 0 : i32
    return %c0_i32, %c0_i32_0 : i32, i32
  }
  func.func @transform_3(%arg0: i32) -> (i32, i32) {
    %c0_i32 = arith.constant 0 : i32
    %c0_i32_0 = arith.constant 0 : i32
    %c0_i32_1 = arith.constant 0 : i32
    return %c0_i32, %c0_i32_0 : i32, i32
  }
  func.func @transform_4(%arg0: i32) -> (i32, i32) {
    %c0_i32 = arith.constant 0 : i32
    %c0_i32_0 = arith.constant 0 : i32
    %c0_i32_1 = arith.constant 0 : i32
    return %c0_i32, %c0_i32_0 : i32, i32
  }
  func.func @transform_5(%arg0: i32) -> (i32, i32) {
    %c0_i32 = arith.constant 0 : i32
    %c0_i32_0 = arith.constant 0 : i32
    %c0_i32_1 = arith.constant 0 : i32
    return %c0_i32, %c0_i32_0 : i32, i32
  }
  func.func @transform_6(%arg0: i32) -> (i32, i32) {
    %c0_i32 = arith.constant 0 : i32
    %c0_i32_0 = arith.constant 0 : i32
    %c0_i32_1 = arith.constant 0 : i32
    return %c0_i32, %c0_i32_0 : i32, i32
  }
  func.func @transform_7(%arg0: i32) -> (i32, i32, i32) {
    %c0_i32 = arith.constant 0 : i32
    %c0_i32_0 = arith.constant 0 : i32
    %c0_i32_1 = arith.constant 0 : i32
    return %arg0, %c0_i32, %c0_i32_0 : i32, i32, i32
  }
  func.func @transform_8(%arg0: i32) -> (i32, i32) {
    %c0_i32 = arith.constant 0 : i32
    %c0_i32_0 = arith.constant 0 : i32
    %c0_i32_1 = arith.constant 0 : i32
    return %c0_i32, %c0_i32_0 : i32, i32
  }
}

</mosaic_0001>

<llo_original>
// kernel: _stateful_mlp_seq.1
$region0: #{_stateful_mlp_seq.1}
  #allocation0 [shape = 'u32[]', space=smem, size = 0x4, offset = 0x4, fixed_abs, tag = 'smem constant byte address 0x4 - core index']
  #allocation1 [shape = 'u32[144,128]{1,0:T(1,128)}', space=vmem, size = 0x12000, scoped, tag = 'internal scratch']
  %s0 = inlined_call_operand.vmem [shape: f32[8,8,32], index: 0, kind: input, shape index: {}]
  %s1 = inlined_call_operand.vmem [shape: f32[8,128], index: 1, kind: input, shape index: {}]
  %s2 = inlined_call_operand.vmem [shape: bf16[32,128], index: 2, kind: input, shape index: {}]
  %s3 = inlined_call_operand.vmem [shape: bf16[128,128], index: 3, kind: input, shape index: {}]
  %s4 = inlined_call_operand.vmem [shape: f32[1,128], index: 4, kind: input, shape index: {}]
  %s5 = inlined_call_operand.hbm [shape: bf16[128,128], index: 5, kind: input, shape index: {}]
  %s6 = inlined_call_operand.vmem [shape: f32[1,128], index: 6, kind: input, shape index: {}]
  %s7 = inlined_call_operand.vmem [shape: f32[8,8,128], index: 7, kind: output, shape index: {0}]
  %s8 = inlined_call_operand.vmem [shape: f32[8,128], index: 8, kind: output, shape index: {1}]
  %9 = xla_tuple %s7, %s8
  %s10 = sld [smem:[#allocation0]]
  $region77: #{_stateful_mlp_seq.1} parent=0
    _
  %s12 = ssub.s32 1, %s10
  %s13 = scalar_select 0, %s12, %s10
  $region1: #{_stateful_mlp_seq.1} parent=0
    #allocation2 [shape = 'u8[32768]{0}', space=vmem, size = 0x8000, scoped, tag = 'input window, operand 5, single buffered']
    #allocation3 [shape = 's32[2]{0}', space=sflag, size = 0x8, scoped, tag = 'scoped memory for _stateful_mlp_seq.1']
    %14 = vsyncpa [#allocation3], 0
    loop: start=0, step=1, limit=10
    $region2: #{_stateful_mlp_seq.1} parent=1 // loop_pre_header
      _
    $region3: #{_stateful_mlp_seq.1} parent=1 // loop_header
      %s16 = sphi 0, %s20
      %p17 = scmp.ge.s32.totalorder %s16, 10
      %s26 = sphi 0, %s28
      %s29 = sphi 0, %s26
      %s30 = sphi 0, %s29
      %s46 = sphi 0, %s30
      %s50 = sphi 0, %s50
      %s52 = sphi 0, %s50
      %s53 = sphi 0, %s52
      %s67 = sphi 0, %s53
      %s71 = sphi 0, %s71
      %s73 = sphi 0, %s71
      %s74 = sphi 0, %s73
      %s88 = sphi 0, %s74
      %s92 = sphi 0, %s92
      %s94 = sphi 0, %s92
      %s95 = sphi 0, %s94
      %s109 = sphi 0, %s95
      %s113 = sphi 0, %s113
      %s115 = sphi 0, %s113
      %s116 = sphi 0, %s115
      %s130 = sphi 0, %s116
      %s134 = sphi 0, %s134
      %s136 = sphi 0, %s134
      %s137 = sphi 0, %s136
      %s151 = sphi 0, %s137
      %s155 = sphi 0, %s155
      %s157 = sphi 0, %s155
      %s158 = sphi 0, %s157
      %s172 = sphi 0, %s158
      %s178 = sphi 0, %s180
      %s181 = sphi 0, %s178
      %s182 = sphi 0, %s181
      %s198 = sphi 0, %s182
      %s202 = sphi 0, %s202
      %s204 = sphi 0, %s202
      %s205 = sphi 0, %s204
      %s219 = sphi 0, %s205
    $region4: #{_stateful_mlp_seq.1} parent=1 // loop_header_branch
      %19 = sbr.rel (%p17) target = $region8
    $region5: #{_stateful_mlp_seq.1} parent=1 // loop_body
      %s21 = ssub.s32 %s16, 1
      %s22 = ssub.s32 %s16, 2
      %s23 = sadd.s32 %s16, 1
      %s24 = ssub.s32 %s16, %s23
      %p25 = scmp.eq.s32.totalorder %s24, 0
      %s27 = sadd.s32 %s26, 1
      %s28 = scalar_select %p25, %s26, %s27
      %p31 = pneg %p25
      %p32 = scmp.eq.s32.totalorder %s16, 7
      %p33 = por %p31, %p32
      %p34 = scmp.ne.s32.totalorder %s26, %s29
      %p35 = scmp.eq.s32.totalorder %s16, 0
      %p36 = por %p34, %p35
      %p37 = scmp.ne.s32.totalorder %s26, %s29
      %p38 = scmp.eq.s32.totalorder %s21, 7
      %p39 = por %p37, %p38
      %p40 = scmp.ne.s32.totalorder %s29, %s30
      %p41 = scmp.eq.s32.totalorder %s21, 0
      %p42 = por %p40, %p41
      %p43 = scmp.ne.s32.totalorder %s29, %s30
      %p44 = scmp.eq.s32.totalorder %s22, 7
      %p45 = por %p43, %p44
      %p47 = scmp.ne.s32.totalorder %s30, %s46
      %p48 = scmp.eq.s32.totalorder %s22, 0
      %p49 = por %p47, %p48
      %s51 = sadd.s32 %s50, 1
      %p54 = scmp.eq.s32.totalorder %s16, 7
      %p55 = scmp.ne.s32.totalorder %s50, %s52
      %p56 = scmp.eq.s32.totalorder %s16, 0
      %p57 = por %p55, %p56
      %p58 = scmp.ne.s32.totalorder %s50, %s52
      %p59 = scmp.eq.s32.totalorder %s21, 7
      %p60 = por %p58, %p59
      %p61 = scmp.ne.s32.totalorder %s52, %s53
      %p62 = scmp.eq.s32.totalorder %s21, 0
      %p63 = por %p61, %p62
      %p64 = scmp.ne.s32.totalorder %s52, %s53
      %p65 = scmp.eq.s32.totalorder %s22, 7
      %p66 = por %p64, %p65
      %p68 = scmp.ne.s32.totalorder %s53, %s67
      %p69 = scmp.eq.s32.totalorder %s22, 0
      %p70 = por %p68, %p69
      %s72 = sadd.s32 %s71, 1
      %p75 = scmp.eq.s32.totalorder %s16, 7
      %p76 = scmp.ne.s32.totalorder %s71, %s73
      %p77 = scmp.eq.s32.totalorder %s16, 0
      %p78 = por %p76, %p77
      %p79 = scmp.ne.s32.totalorder %s71, %s73
      %p80 = scmp.eq.s32.totalorder %s21, 7
      %p81 = por %p79, %p80
      %p82 = scmp.ne.s32.totalorder %s73, %s74
      %p83 = scmp.eq.s32.totalorder %s21, 0
      %p84 = por %p82, %p83
      %p85 = scmp.ne.s32.totalorder %s73, %s74
      %p86 = scmp.eq.s32.totalorder %s22, 7
      %p87 = por %p85, %p86
      %p89 = scmp.ne.s32.totalorder %s74, %s88
      %p90 = scmp.eq.s32.totalorder %s22, 0
      %p91 = por %p89, %p90
      %s93 = sadd.s32 %s92, 1
      %p96 = scmp.eq.s32.totalorder %s16, 7
      %p97 = scmp.ne.s32.totalorder %s92, %s94
      %p98 = scmp.eq.s32.totalorder %s16, 0
      %p99 = por %p97, %p98
      %p100 = scmp.ne.s32.totalorder %s92, %s94
      %p101 = scmp.eq.s32.totalorder %s21, 7
      %p102 = por %p100, %p101
      %p103 = scmp.ne.s32.totalorder %s94, %s95
      %p104 = scmp.eq.s32.totalorder %s21, 0
      %p105 = por %p103, %p104
      %p106 = scmp.ne.s32.totalorder %s94, %s95
      %p107 = scmp.eq.s32.totalorder %s22, 7
      %p108 = por %p106, %p107
      %p110 = scmp.ne.s32.totalorder %s95, %s109
      %p111 = scmp.eq.s32.totalorder %s22, 0
      %p112 = por %p110, %p111
      %s114 = sadd.s32 %s113, 1
      %p117 = scmp.eq.s32.totalorder %s16, 7
      %p118 = scmp.ne.s32.totalorder %s113, %s115
      %p119 = scmp.eq.s32.totalorder %s16, 0
      %p120 = por %p118, %p119
      %p121 = scmp.ne.s32.totalorder %s113, %s115
      %p122 = scmp.eq.s32.totalorder %s21, 7
      %p123 = por %p121, %p122
      %p124 = scmp.ne.s32.totalorder %s115, %s116
      %p125 = scmp.eq.s32.totalorder %s21, 0
      %p126 = por %p124, %p125
      %p127 = scmp.ne.s32.totalorder %s115, %s116
      %p128 = scmp.eq.s32.totalorder %s22, 7
      %p129 = por %p127, %p128
      %p131 = scmp.ne.s32.totalorder %s116, %s130
      %p132 = scmp.eq.s32.totalorder %s22, 0
      %p133 = por %p131, %p132
      %s135 = sadd.s32 %s134, 1
      %p138 = scmp.eq.s32.totalorder %s16, 7
      %p139 = scmp.ne.s32.totalorder %s134, %s136
      %p140 = scmp.eq.s32.totalorder %s16, 0
      %p141 = por %p139, %p140
      %p142 = scmp.ne.s32.totalorder %s134, %s136
      %p143 = scmp.eq.s32.totalorder %s21, 7
      %p144 = por %p142, %p143
      %p145 = scmp.ne.s32.totalorder %s136, %s137
      %p146 = scmp.eq.s32.totalorder %s21, 0
      %p147 = por %p145, %p146
      %p148 = scmp.ne.s32.totalorder %s136, %s137
      %p149 = scmp.eq.s32.totalorder %s22, 7
      %p150 = por %p148, %p149
      %p152 = scmp.ne.s32.totalorder %s137, %s151
      %p153 = scmp.eq.s32.totalorder %s22, 0
      %p154 = por %p152, %p153
      %s156 = sadd.s32 %s155, 1
      %p159 = scmp.eq.s32.totalorder %s16, 7
      %p160 = scmp.ne.s32.totalorder %s155, %s157
      %p161 = scmp.eq.s32.totalorder %s16, 0
      %p162 = por %p160, %p161
      %p163 = scmp.ne.s32.totalorder %s155, %s157
      %p164 = scmp.eq.s32.totalorder %s21, 7
      %p165 = por %p163, %p164
      %p166 = scmp.ne.s32.totalorder %s157, %s158
      %p167 = scmp.eq.s32.totalorder %s21, 0
      %p168 = por %p166, %p167
      %p169 = scmp.ne.s32.totalorder %s157, %s158
      %p170 = scmp.eq.s32.totalorder %s22, 7
      %p171 = por %p169, %p170
      %p173 = scmp.ne.s32.totalorder %s158, %s172
      %p174 = scmp.eq.s32.totalorder %s22, 0
      %p175 = por %p173, %p174
      %s176 = ssub.s32 %s16, %s23
      %p177 = scmp.eq.s32.totalorder %s176, 0
      %s179 = sadd.s32 %s178, 1
      %s180 = scalar_select %p177, %s178, %s179
      %p183 = pneg %p177
      %p184 = scmp.eq.s32.totalorder %s16, 7
      %p185 = por %p183, %p184
      %p186 = scmp.ne.s32.totalorder %s178, %s181
      %p187 = scmp.eq.s32.totalorder %s16, 0
      %p188 = por %p186, %p187
      %p189 = scmp.ne.s32.totalorder %s178, %s181
      %p190 = scmp.eq.s32.totalorder %s21, 7
      %p191 = por %p189, %p190
      %p192 = scmp.ne.s32.totalorder %s181, %s182
      %p193 = scmp.eq.s32.totalorder %s21, 0
      %p194 = por %p192, %p193
      %p195 = scmp.ne.s32.totalorder %s181, %s182
      %p196 = scmp.eq.s32.totalorder %s22, 7
      %p197 = por %p195, %p196
      %p199 = scmp.ne.s32.totalorder %s182, %s198
      %p200 = scmp.eq.s32.totalorder %s22, 0
      %p201 = por %p199, %p200
      %s203 = sadd.s32 %s202, 1
      %p206 = scmp.eq.s32.totalorder %s16, 7
      %p207 = scmp.ne.s32.totalorder %s202, %s204
      %p208 = scmp.eq.s32.totalorder %s16, 0
      %p209 = por %p207, %p208
      %p210 = scmp.ne.s32.totalorder %s202, %s204
      %p211 = scmp.eq.s32.totalorder %s21, 7
      %p212 = por %p210, %p211
      %p213 = scmp.ne.s32.totalorder %s204, %s205
      %p214 = scmp.eq.s32.totalorder %s21, 0
      %p215 = por %p213, %p214
      %p216 = scmp.ne.s32.totalorder %s204, %s205
      %p217 = scmp.eq.s32.totalorder %s22, 7
      %p218 = por %p216, %p217
      %p220 = scmp.ne.s32.totalorder %s205, %s219
      %p221 = scmp.eq.s32.totalorder %s22, 0
      %p222 = por %p220, %p221
      %p223 = scmp.le.s32.totalorder 1, %s16
      %p224 = scmp.lt.s32.totalorder %s16, 9
      %p225 = pnand %p223, %p224
      %p226 = pneg %p225
      // Predicated region
      $region9: #{_stateful_mlp_seq.1} parent=5 // pred_check
        _
      $region10: #{_stateful_mlp_seq.1} parent=5 // pred_check_branch
        %228 = sbr.rel (%p225) target = $region12
      $region11: #{_stateful_mlp_seq.1} parent=5 // pred_region
        %s229 = ssub.s32 %s16, 1
        // Predicated region
        $region13: #{_stateful_mlp_seq.1} parent=11 // pred_check
          %p230 = pneg %p63
        $region14: #{_stateful_mlp_seq.1} parent=11 // pred_check_branch
          %232 = sbr.rel (%p230) target = $region16
        $region15: #{_stateful_mlp_seq.1} parent=11 // pred_region
          _
        $region16: #{_stateful_mlp_seq.1} parent=11 // pred_fallthru
          _
        // Predicated region
        $region17: #{_stateful_mlp_seq.1} parent=11 // pred_check
          %p233 = pneg %p84
        $region18: #{_stateful_mlp_seq.1} parent=11 // pred_check_branch
          %235 = sbr.rel (%p233) target = $region20
        $region19: #{_stateful_mlp_seq.1} parent=11 // pred_region
          _
        $region20: #{_stateful_mlp_seq.1} parent=11 // pred_fallthru
          _
        // Predicated region
        $region21: #{_stateful_mlp_seq.1} parent=11 // pred_check
          %p236 = pneg %p105
        $region22: #{_stateful_mlp_seq.1} parent=11 // pred_check_branch
          %238 = sbr.rel (%p236) target = $region24
        $region23: #{_stateful_mlp_seq.1} parent=11 // pred_region
          _
        $region24: #{_stateful_mlp_seq.1} parent=11 // pred_fallthru
          _
        // Predicated region
        $region25: #{_stateful_mlp_seq.1} parent=11 // pred_check
          %p239 = pneg %p126
        $region26: #{_stateful_mlp_seq.1} parent=11 // pred_check_branch
          %241 = sbr.rel (%p239) target = $region28
        $region27: #{_stateful_mlp_seq.1} parent=11 // pred_region
          _
        $region28: #{_stateful_mlp_seq.1} parent=11 // pred_fallthru
          _
        // Predicated region
        $region29: #{_stateful_mlp_seq.1} parent=11 // pred_check
          %p242 = pneg %p147
        $region30: #{_stateful_mlp_seq.1} parent=11 // pred_check_branch
          %244 = sbr.rel (%p242) target = $region32
        $region31: #{_stateful_mlp_seq.1} parent=11 // pred_region
          %s246 = ssub.s32 1024, 1024
          %247 = vsyncadd [#allocation3], %s246
          %s248 = sshll.u32 [#allocation2], 4
          %s249 = int_to_ptr.vmem [resolvable:$true] %s248
          %254 = dma.hbm_to_vmem [thread:$0]  %s5, 1024, %s249, [#allocation3], 64, 64, 4
        $region32: #{_stateful_mlp_seq.1} parent=11 // pred_fallthru
          _
        // Predicated region
        $region33: #{_stateful_mlp_seq.1} parent=11 // pred_check
          %p255 = pneg %p168
        $region34: #{_stateful_mlp_seq.1} parent=11 // pred_check_branch
          %257 = sbr.rel (%p255) target = $region36
        $region35: #{_stateful_mlp_seq.1} parent=11 // pred_region
          _
        $region36: #{_stateful_mlp_seq.1} parent=11 // pred_fallthru
          _
      $region12: #{_stateful_mlp_seq.1} parent=5 // pred_fallthru
        _
      %p258 = scmp.lt.s32.totalorder %s16, 8
      // Predicated region
      $region37: #{_stateful_mlp_seq.1} parent=5 // pred_check
        %p259 = pneg %p258
      $region38: #{_stateful_mlp_seq.1} parent=5 // pred_check_branch
        %261 = sbr.rel (%p259) target = $region40
      $region39: #{_stateful_mlp_seq.1} parent=5 // pred_region
        // Predicated region
        $region41: #{_stateful_mlp_seq.1} parent=39 // pred_check
          %p262 = pneg %p36
        $region42: #{_stateful_mlp_seq.1} parent=39 // pred_check_branch
          %264 = sbr.rel (%p262) target = $region44
        $region43: #{_stateful_mlp_seq.1} parent=39 // pred_region
          %p265 = scmp.lt.s32.totalorder %s16, 7
          %s266 = scalar_select %p265, %s16, 7
          %s267 = smul.addr %s266, 8
          %s268 = scalar_lea.vmem %s0, %s267
        $region44: #{_stateful_mlp_seq.1} parent=39 // pred_fallthru
          _
      $region40: #{_stateful_mlp_seq.1} parent=5 // pred_fallthru
        _
      %p269 = scmp.le.s32.totalorder 1, %s16
      %p270 = scmp.lt.s32.totalorder %s16, 9
      %p271 = pnand %p269, %p270
      %p272 = pneg %p271
      // Predicated region
      $region45: #{_stateful_mlp_seq.1} parent=5 // pred_check
        _
      $region46: #{_stateful_mlp_seq.1} parent=5 // pred_check_branch
        %274 = sbr.rel (%p271) target = $region48
      $region47: #{_stateful_mlp_seq.1} parent=5 // pred_region
        %s275 = ssub.s32 %s16, 1
        // Predicated region
        $region49: #{_stateful_mlp_seq.1} parent=47 // pred_check
          %p276 = pneg %p147
        $region50: #{_stateful_mlp_seq.1} parent=47 // pred_check_branch
          %278 = sbr.rel (%p276) target = $region52
        $region51: #{_stateful_mlp_seq.1} parent=47 // pred_region
          %279 = dma.done [#allocation3], 1024
        $region52: #{_stateful_mlp_seq.1} parent=47 // pred_fallthru
          _
        %p280 = scmp.lt.s32.totalorder %s21, 7
        %s281 = scalar_select %p280, %s21, 7
        %s282 = smul.addr %s281, 8
        %s283 = scalar_lea.vmem %s0, %s282
        %p284 = pneg %p42
        %p285 = pneg %p39
        %p286 = pneg %p63
        %p287 = pneg %p60
        %p288 = pneg %p84
        %p289 = pneg %p81
        %p290 = pneg %p105
        %p291 = pneg %p102
        %p292 = pneg %p126
        %p293 = pneg %p123
        %p294 = pneg %p147
        %p295 = pneg %p144
        %p296 = pneg %p168
        %p297 = pneg %p165
        %p298 = pneg %p194
        %p299 = pneg %p191
        %p300 = scmp.lt.s32.totalorder %s21, 7
        %s301 = scalar_select %p300, %s21, 7
        %s302 = smul.addr %s301, 8
        %s303 = scalar_lea.vmem %s7, %s302
        %p304 = pneg %p215
        %p305 = pneg %p212
        %p306 = scmp.lt.s32.totalorder %s21, 7
        %s307 = scalar_select %p306, %s21, 7
        %s308 = smul.addr %s307, 8
        %s309 = scalar_lea.vmem %s0, %s308
        %p310 = scmp.lt.s32.totalorder %s21, 7
        %s311 = scalar_select %p310, %s21, 7
        %s312 = smul.addr %s311, 8
        %s313 = scalar_lea.vmem %s7, %s312
        %p315 = scmp.eq.s32.totalorder %s21, 0
        // Predicated region
        $region53: #{_stateful_mlp_seq.1} parent=47 // pred_check
          %p316 = pneg %p315
        $region54: #{_stateful_mlp_seq.1} parent=47 // pred_check_branch
          %318 = sbr.rel (%p316) target = $region56
        $region55: #{_stateful_mlp_seq.1} parent=47 // pred_region
          %v319 = vld [vmem:[%s1] sm:$0xff]
          %320 = vst [vmem:[%s8] sm:$0xff] %v319
        $region56: #{_stateful_mlp_seq.1} parent=47 // pred_fallthru
          _
        %v321 = vld [vmem:[%s309] sm:$0xff]
        %v322 = vld [vmem:[%s8] sm:$0xff]
        %v323 = vpack.c.bf16 %v321, %v321
        %v324 = vld [vmem:[%s2] sm:$0xf]
        %v325 = vld [vmem:[%s2 + $0x4] sm:$0xf]
        %v326 = vld [vmem:[%s2 + $0x8] sm:$0xf]
        %v327 = vld [vmem:[%s2 + $0xc] sm:$0xf]
        %v328 = vpack.c.bf16 %v322, %v322
        %v329 = vld [vmem:[%s3] sm:$0xf]
        %v330 = vld [vmem:[%s3 + $0x4] sm:$0xf]
        %v331 = vld [vmem:[%s3 + $0x8] sm:$0xf]
        %v332 = vld [vmem:[%s3 + $0xc] sm:$0xf]
        %v333 = vld [vmem:[%s3 + $0x10] sm:$0xf]
        %v334 = vld [vmem:[%s3 + $0x14] sm:$0xf]
        %v335 = vld [vmem:[%s3 + $0x18] sm:$0xf]
        %v336 = vld [vmem:[%s3 + $0x1c] sm:$0xf]
        %v337 = vld [vmem:[%s3 + $0x20] sm:$0xf]
        %v338 = vld [vmem:[%s3 + $0x24] sm:$0xf]
        %v339 = vld [vmem:[%s3 + $0x28] sm:$0xf]
        %v340 = vld [vmem:[%s3 + $0x2c] sm:$0xf]
        %v341 = vld [vmem:[%s3 + $0x30] sm:$0xf]
        %v342 = vld [vmem:[%s3 + $0x34] sm:$0xf]
        %v343 = vld [vmem:[%s3 + $0x38] sm:$0xf]
        %v344 = vld [vmem:[%s3 + $0x3c] sm:$0xf]
        %v361 = vunpack.c.l.b16 %v329
        %v362 = vunpack.c.l.b16 %v330
        %v363 = vunpack.c.l.b16 %v331
        %v364 = vunpack.c.l.b16 %v332
        %v365 = vunpack.c.l.b16 %v333
        %v366 = vunpack.c.l.b16 %v334
        %v367 = vunpack.c.l.b16 %v335
        %v368 = vunpack.c.l.b16 %v336
        %v369 = vunpack.c.l.b16 %v337
        %v370 = vunpack.c.l.b16 %v338
        %v371 = vunpack.c.l.b16 %v339
        %v372 = vunpack.c.l.b16 %v340
        %v373 = vunpack.c.l.b16 %v341
        %v374 = vunpack.c.l.b16 %v342
        %v375 = vunpack.c.l.b16 %v343
        %v376 = vunpack.c.l.b16 %v344
        %v377 = vpack.c.b16 %v362, %v361
        %v378 = vpack.c.b16 %v364, %v363
        %v379 = vpack.c.b16 %v366, %v365
        %v380 = vpack.c.b16 %v368, %v367
        %v381 = vpack.c.b16 %v370, %v369
        %v382 = vpack.c.b16 %v372, %v371
        %v383 = vpack.c.b16 %v374, %v373
        %v384 = vpack.c.b16 %v376, %v375
        %393 = vmatprep.subr.bf16.mxu0 0
        %394 = vmatpush1.bf16.msra.mxu0 %v384
        %395 = vmatprep.subr.bf16.mxu0 0
        %396 = vmatpush1.bf16.msra.mxu0 %v383
        %397 = vmatprep.subr.bf16.mxu0 0
        %398 = vmatpush1.bf16.msra.mxu0 %v382
        %399 = vmatprep.subr.bf16.mxu0 0
        %400 = vmatpush1.bf16.msra.mxu0 %v381
        %401 = vmatprep.subr.bf16.mxu0 0
        %402 = vmatpush1.bf16.msra.mxu0 %v380
        %403 = vmatprep.subr.bf16.mxu0 0
        %404 = vmatpush1.bf16.msra.mxu0 %v379
        %405 = vmatprep.subr.bf16.mxu0 0
        %406 = vmatpush1.bf16.msra.mxu0 %v378
        %407 = vmatprep.subr.bf16.mxu0 0
        %408 = vmatpush1.bf16.msra.mxu0 %v377
        %409 = vmatprep.subr.bf16.mxu0 0
        %410 = vmatpush2.bf16.msra.mxu0 0
        %411 = vmatprep.subr.bf16.mxu0 0
        %412 = vmatpush2.bf16.msra.mxu0 0
        %413 = vmatprep.subr.bf16.mxu0 0
        %414 = vmatpush2.bf16.msra.mxu0 0
        %415 = vmatprep.subr.bf16.mxu0 0
        %416 = vmatpush2.bf16.msra.mxu0 0
        %417 = vmatprep.subr.bf16.mxu0 0
        %418 = vmatpush2.bf16.msra.mxu0 0
        %419 = vmatprep.subr.bf16.mxu0 0
        %420 = vmatpush2.bf16.msra.mxu0 0
        %421 = vmatprep.subr.bf16.mxu0 0
        %422 = vmatpush2.bf16.msra.mxu0 0
        %423 = vmatprep.subr.bf16.mxu0 0
        %424 = vmatpush2.bf16.msra.mxu0 0
        %425 = vmatprep.mubr.bf16.mxu0 0
        %426 = vmatmul.mubr.bf16.gmra.mxu0 %v328
        %v427 = vpop.f32.mrf.mxu0
        %v428 = vadd.f32 0.0, %v427
        %v429 = vpop.f32.mrf.mxu0
        %v430 = vpop.f32.mrf.mxu0
        %v431 = vpop.f32.mrf.mxu0
        %432 = vdwg.mxu0
        %v437 = vunpack.c.l.b16 %v324
        %v438 = vunpack.c.l.b16 %v325
        %v439 = vunpack.c.l.b16 %v326
        %v440 = vunpack.c.l.b16 %v327
        %v441 = vpack.c.b16 %v438, %v437
        %v442 = vpack.c.b16 %v440, %v439
        %vm445 = vcmask 261120
        %v447 = vsel %vm445, %v323, 0
        %449 = vmatprep.subr.bf16.mxu0 0
        %450 = vmatpush1.bf16.msra.mxu0 0
        %451 = vmatprep.subr.bf16.mxu0 0
        %452 = vmatpush1.bf16.msra.mxu0 0
        %453 = vmatprep.subr.bf16.mxu0 0
        %454 = vmatpush1.bf16.msra.mxu0 0
        %455 = vmatprep.subr.bf16.mxu0 0
        %456 = vmatpush1.bf16.msra.mxu0 0
        %457 = vmatprep.subr.bf16.mxu0 0
        %458 = vmatpush1.bf16.msra.mxu0 0
        %459 = vmatprep.subr.bf16.mxu0 0
        %460 = vmatpush1.bf16.msra.mxu0 0
        %461 = vmatprep.subr.bf16.mxu0 0
        %462 = vmatpush1.bf16.msra.mxu0 %v442
        %463 = vmatprep.subr.bf16.mxu0 0
        %464 = vmatpush1.bf16.msra.mxu0 %v441
        %465 = vmatprep.subr.bf16.mxu0 0
        %466 = vmatpush2.bf16.msra.mxu0 0
        %467 = vmatprep.subr.bf16.mxu0 0
        %468 = vmatpush2.bf16.msra.mxu0 0
        %469 = vmatprep.subr.bf16.mxu0 0
        %470 = vmatpush2.bf16.msra.mxu0 0
        %471 = vmatprep.subr.bf16.mxu0 0
        %472 = vmatpush2.bf16.msra.mxu0 0
        %473 = vmatprep.subr.bf16.mxu0 0
        %474 = vmatpush2.bf16.msra.mxu0 0
        %475 = vmatprep.subr.bf16.mxu0 0
        %476 = vmatpush2.bf16.msra.mxu0 0
        %477 = vmatprep.subr.bf16.mxu0 0
        %478 = vmatpush2.bf16.msra.mxu0 0
        %479 = vmatprep.subr.bf16.mxu0 0
        %480 = vmatpush2.bf16.msra.mxu0 0
        %481 = vmatprep.mubr.bf16.mxu0 0
        %482 = vmatmul.mubr.bf16.gmra.mxu0 %v447
        %v483 = vpop.f32.mrf.mxu0
        %v484 = vadd.f32 %v428, %v483
        %v485 = vpop.f32.mrf.mxu0
        %v486 = vpop.f32.mrf.mxu0
        %v487 = vpop.f32.mrf.mxu0
        %488 = vdwg.mxu0
        %v489 = vld [vmem:[%s4] sm:$0x1]
        %v491 = vlaneseq
        %v492 = vshrl.u32 %v491, 7
        %v493 = vsub.s32 0, %v492
        %v494 = vrot.slane %v489, %v493
        %v496 = vadd.f32 %v484, %v494
        %v497 = vtanh.pop %v496
        %498 = vst [vmem:[%s8] sm:$0xff] %v497
        %v499 = vpack.c.bf16 %v497, %v497
        %v500 = vld [vmem:[#allocation2] sm:$0xf]
        %v501 = vld [vmem:[#allocation2 + $0x4] sm:$0xf]
        %v502 = vld [vmem:[#allocation2 + $0x8] sm:$0xf]
        %v503 = vld [vmem:[#allocation2 + $0xc] sm:$0xf]
        %v504 = vld [vmem:[#allocation2 + $0x10] sm:$0xf]
        %v505 = vld [vmem:[#allocation2 + $0x14] sm:$0xf]
        %v506 = vld [vmem:[#allocation2 + $0x18] sm:$0xf]
        %v507 = vld [vmem:[#allocation2 + $0x1c] sm:$0xf]
        %v508 = vld [vmem:[#allocation2 + $0x20] sm:$0xf]
        %v509 = vld [vmem:[#allocation2 + $0x24] sm:$0xf]
        %v510 = vld [vmem:[#allocation2 + $0x28] sm:$0xf]
        %v511 = vld [vmem:[#allocation2 + $0x2c] sm:$0xf]
        %v512 = vld [vmem:[#allocation2 + $0x30] sm:$0xf]
        %v513 = vld [vmem:[#allocation2 + $0x34] sm:$0xf]
        %v514 = vld [vmem:[#allocation2 + $0x38] sm:$0xf]
        %v515 = vld [vmem:[#allocation2 + $0x3c] sm:$0xf]
        %v516 = vld [vmem:[%s6] sm:$0x1]
        %v518 = vlaneseq
        %v519 = vshrl.u32 %v518, 7
        %v520 = vsub.s32 0, %v519
        %v521 = vrot.slane %v516, %v520
        %v539 = vunpack.c.l.b16 %v500
        %v540 = vunpack.c.l.b16 %v501
        %v541 = vunpack.c.l.b16 %v502
        %v542 = vunpack.c.l.b16 %v503
        %v543 = vunpack.c.l.b16 %v504
        %v544 = vunpack.c.l.b16 %v505
        %v545 = vunpack.c.l.b16 %v506
        %v546 = vunpack.c.l.b16 %v507
        %v547 = vunpack.c.l.b16 %v508
        %v548 = vunpack.c.l.b16 %v509
        %v549 = vunpack.c.l.b16 %v510
        %v550 = vunpack.c.l.b16 %v511
        %v551 = vunpack.c.l.b16 %v512
        %v552 = vunpack.c.l.b16 %v513
        %v553 = vunpack.c.l.b16 %v514
        %v554 = vunpack.c.l.b16 %v515
        %v555 = vpack.c.b16 %v540, %v539
        %v556 = vpack.c.b16 %v542, %v541
        %v557 = vpack.c.b16 %v544, %v543
        %v558 = vpack.c.b16 %v546, %v545
        %v559 = vpack.c.b16 %v548, %v547
        %v560 = vpack.c.b16 %v550, %v549
        %v561 = vpack.c.b16 %v552, %v551
        %v562 = vpack.c.b16 %v554, %v553
        %571 = vmatprep.subr.bf16.mxu0 0
        %572 = vmatpush1.bf16.msra.mxu0 %v562
        %573 = vmatprep.subr.bf16.mxu0 0
        %574 = vmatpush1.bf16.msra.mxu0 %v561
        %575 = vmatprep.subr.bf16.mxu0 0
        %576 = vmatpush1.bf16.msra.mxu0 %v560
        %577 = vmatprep.subr.bf16.mxu0 0
        %578 = vmatpush1.bf16.msra.mxu0 %v559
        %579 = vmatprep.subr.bf16.mxu0 0
        %580 = vmatpush1.bf16.msra.mxu0 %v558
        %581 = vmatprep.subr.bf16.mxu0 0
        %582 = vmatpush1.bf16.msra.mxu0 %v557
        %583 = vmatprep.subr.bf16.mxu0 0
        %584 = vmatpush1.bf16.msra.mxu0 %v556
        %585 = vmatprep.subr.bf16.mxu0 0
        %586 = vmatpush1.bf16.msra.mxu0 %v555
        %587 = vmatprep.subr.bf16.mxu0 0
        %588 = vmatpush2.bf16.msra.mxu0 0
        %589 = vmatprep.subr.bf16.mxu0 0
        %590 = vmatpush2.bf16.msra.mxu0 0
        %591 = vmatprep.subr.bf16.mxu0 0
        %592 = vmatpush2.bf16.msra.mxu0 0
        %593 = vmatprep.subr.bf16.mxu0 0
        %594 = vmatpush2.bf16.msra.mxu0 0
        %595 = vmatprep.subr.bf16.mxu0 0
        %596 = vmatpush2.bf16.msra.mxu0 0
        %597 = vmatprep.subr.bf16.mxu0 0
        %598 = vmatpush2.bf16.msra.mxu0 0
        %599 = vmatprep.subr.bf16.mxu0 0
        %600 = vmatpush2.bf16.msra.mxu0 0
        %601 = vmatprep.subr.bf16.mxu0 0
        %602 = vmatpush2.bf16.msra.mxu0 0
        %603 = vmatprep.mubr.bf16.mxu0 0
        %604 = vmatmul.mubr.bf16.gmra.mxu0 %v499
        %v605 = vpop.f32.mrf.mxu0
        %v606 = vadd.f32 %v521, %v605
        %v607 = vpop.f32.mrf.mxu0
        %v608 = vpop.f32.mrf.mxu0
        %v609 = vpop.f32.mrf.mxu0
        %610 = vdwg.mxu0
        %611 = vst [vmem:[%s313] sm:$0xff] %v606
        %p612 = scmp.lt.s32.totalorder %s21, 7
        %s613 = scalar_select %p612, %s21, 7
        %s614 = smul.addr %s613, 8
        %s615 = scalar_lea.vmem %s7, %s614
        // Predicated region
        $region57: #{_stateful_mlp_seq.1} parent=47 // pred_check
          %p616 = pneg %p191
        $region58: #{_stateful_mlp_seq.1} parent=47 // pred_check_branch
          %618 = sbr.rel (%p616) target = $region60
        $region59: #{_stateful_mlp_seq.1} parent=47 // pred_region
          _
        $region60: #{_stateful_mlp_seq.1} parent=47 // pred_fallthru
          _
        // Predicated region
        $region61: #{_stateful_mlp_seq.1} parent=47 // pred_check
          %p619 = pneg %p212
        $region62: #{_stateful_mlp_seq.1} parent=47 // pred_check_branch
          %621 = sbr.rel (%p619) target = $region64
        $region63: #{_stateful_mlp_seq.1} parent=47 // pred_region
          _
        $region64: #{_stateful_mlp_seq.1} parent=47 // pred_fallthru
          _
        // Predicated region
        $region65: #{_stateful_mlp_seq.1} parent=47 // pred_check
          %p622 = pneg %p212
        $region66: #{_stateful_mlp_seq.1} parent=47 // pred_check_branch
          %624 = sbr.rel (%p622) target = $region68
        $region67: #{_stateful_mlp_seq.1} parent=47 // pred_region
          _
        $region68: #{_stateful_mlp_seq.1} parent=47 // pred_fallthru
          _
      $region48: #{_stateful_mlp_seq.1} parent=5 // pred_fallthru
        _
      %p625 = scmp.le.s32.totalorder 2, %s16
      // Predicated region
      $region69: #{_stateful_mlp_seq.1} parent=5 // pred_check
        %p626 = pneg %p625
      $region70: #{_stateful_mlp_seq.1} parent=5 // pred_check_branch
        %628 = sbr.rel (%p626) target = $region72
      $region71: #{_stateful_mlp_seq.1} parent=5 // pred_region
        %s629 = ssub.s32 %s16, 2
        // Predicated region
        $region73: #{_stateful_mlp_seq.1} parent=71 // pred_check
          %p630 = pneg %p197
        $region74: #{_stateful_mlp_seq.1} parent=71 // pred_check_branch
          %632 = sbr.rel (%p630) target = $region76
        $region75: #{_stateful_mlp_seq.1} parent=71 // pred_region
          %p633 = scmp.lt.s32.totalorder %s22, 7
          %s634 = scalar_select %p633, %s22, 7
          %s635 = smul.addr %s634, 8
          %s636 = scalar_lea.vmem %s7, %s635
        $region76: #{_stateful_mlp_seq.1} parent=71 // pred_fallthru
          _
      $region72: #{_stateful_mlp_seq.1} parent=5 // pred_fallthru
        _
    $region6: #{_stateful_mlp_seq.1} parent=1 // loop_footer
      %s20 = sadd.s32 1, %s16
    $region7: #{_stateful_mlp_seq.1} parent=1 // loop_footer_branch
      %15 = sbr.rel target = $region3
    $region8: #{_stateful_mlp_seq.1} parent=1 // loop_exit
      _
    %637 = vsyncpa [#allocation3], 1
    %s638 = scalar_lea.sflag [#allocation3], 1
    %639 = vsyncpa %s638, 1

</llo_original>
